<compile_context>
chip_gen: v7x
topology: tpu7x:2x2x1
jax: 0.10.0
libtpu: 0.0.40
codegen_flags: <defaults>
</compile_context>

<pallas_src>
import functools

import jax
import jax.numpy as jnp
from jax import lax
from jax.experimental import pallas as pl
from jax.experimental.pallas import tpu as pltpu


def lsl_kernel(inv_sigma_ref, x_ref, w_ref, b_ref, o_ref, acc_ref):
    """Computes one (tm, tn) output tile; grid axis 2 (K) is the reduction."""
    k = pl.program_id(2)

    @pl.when(k == 0)
    def _():
        acc_ref[...] = jnp.zeros_like(acc_ref)

    # x_ref: (tm, tk) bf16, w_ref: (tn, tk) bf16 (native PyTorch (OUT, IN)
    # layout). Contract the last dim of both operands -> MXU consumes W
    # directly, no XLU transpose of the tile.
    acc_ref[...] += lax.dot_general(
        x_ref[...],
        w_ref[...],
        dimension_numbers=(((1,), (1,)), ((), ())),
        preferred_element_type=jnp.float32,
    )

    @pl.when(k == pl.num_programs(2) - 1)
    def _():
        inv_sigma = inv_sigma_ref[0, 0]
        z = acc_ref[...] * inv_sigma + b_ref[...]
        # LeakyReLU(0.01): single VPU max instead of compare+select.
        o_ref[...] = jnp.maximum(z, 0.01 * z).astype(o_ref.dtype)


def _power_iteration_sigma(w, u0, v0, n_iters=1, eps=1e-12):
    """Power iteration mirroring torch's _SpectralNorm (sigma = <u, W v>).

    torch runs 1 iteration per forward on persistent u/v buffers; u0/v0 play
    the role of those buffers here.
    """
    def normalize(x):
        return x / jnp.maximum(jnp.linalg.norm(x), eps)

    u, v = normalize(u0), normalize(v0)

    def body(_, uv):
        u, v = uv
        u = normalize(w @ v)       # u <- normalize(W v)
        v = normalize(w.T @ u)     # v <- normalize(W^T u)
        return (u, v)

    u, v = lax.fori_loop(0, n_iters, body, (u, v))
    return jnp.vdot(u, w @ v)


def _round_up(x, m):
    return (x + m - 1) // m * m


def _pad_to(a, shape):
    pads = [(0, s - d) for d, s in zip(a.shape, shape)]
    if all(p == (0, 0) for p in pads):
        return a
    return jnp.pad(a, pads)


@functools.partial(jax.jit, static_argnames=("n_power_iterations",))
def lsl_forward(x, w, b, u0, v0, n_power_iterations=1):
    """y = LeakyReLU( x @ (W / sigma)^T + b ), sigma from power iteration."""
    B, IN = x.shape
    OUT = w.shape[0]

    # --- sigma: tiny plain-JAX glue (W streamed once, 1 iteration) ----------
    # TODO(synk): torch's spectral_norm also writes the updated u/v back into
    # persistent module buffers; we take them as inputs and do not write back.
    sigma = _power_iteration_sigma(
        w.astype(jnp.float32), u0, v0, n_iters=n_power_iterations)
    inv_sigma = (1.0 / sigma).astype(jnp.float32).reshape(1, 1)

    # --- tiling: lane-dense (128-multiple) N and K, 8-multiple M ------------
    tm = min(128, _round_up(B, 8))
    tn = min(256, _round_up(OUT, 128))
    tk = min(512, _round_up(IN, 128))
    M, N, K = _round_up(B, tm), _round_up(OUT, tn), _round_up(IN, tk)

    # bf16 operands for the MXU (f32 accumulation inside); f32 bias/epilogue.
    x_p = _pad_to(x.astype(jnp.bfloat16), (M, K))
    w_p = _pad_to(w.astype(jnp.bfloat16), (N, K))
    b_p = _pad_to(b.reshape(1, OUT).astype(jnp.float32), (1, N))

    grid = (M // tm, N // tn, K // tk)

    out_p = pl.pallas_call(
        lsl_kernel,
        out_shape=jax.ShapeDtypeStruct((M, N), jnp.float32),
        grid=grid,
        in_specs=[
            pl.BlockSpec((1, 1), lambda i, j, k: (0, 0),
                         memory_space=pltpu.SMEM),
            pl.BlockSpec((tm, tk), lambda i, j, k: (i, k)),   # x tile
            pl.BlockSpec((tn, tk), lambda i, j, k: (j, k)),   # W tile (OUT,IN)
            pl.BlockSpec((1, tn), lambda i, j, k: (0, j)),    # bias tile
        ],
        out_specs=pl.BlockSpec((tm, tn), lambda i, j, k: (i, j)),
        scratch_shapes=[pltpu.VMEM((tm, tn), jnp.float32)],
        compiler_params=pltpu.CompilerParams(
            dimension_semantics=("parallel", "parallel", "arbitrary"),
            vmem_limit_bytes=32 * 1024 * 1024,
        ),
    )(inv_sigma, x_p, w_p, b_p)

    return out_p[:B, :OUT]


if __name__ == "__main__":
    key = jax.random.PRNGKey(0)
    k_x, k_w, k_b, k_u, k_v = jax.random.split(key, 5)

    B, IN, OUT = 8, 32, 32  # small shapes: batch=8, in_features=32, out_features=32

    x = jax.random.normal(k_x, (B, IN), dtype=jnp.float32)
    # PyTorch Linear init: uniform(-1/sqrt(in), 1/sqrt(in)).
    bound = 1.0 / (IN ** 0.5)
    w = jax.random.uniform(k_w, (OUT, IN), minval=-bound, maxval=bound,
                           dtype=jnp.float32)
    b = jax.random.uniform(k_b, (OUT,), minval=-bound, maxval=bound,
                           dtype=jnp.float32)
    u0 = jax.random.normal(k_u, (OUT,), dtype=jnp.float32)
    v0 = jax.random.normal(k_v, (IN,), dtype=jnp.float32)

    out = lsl_forward(x, w, b, u0, v0)
    out = jax.block_until_ready(out)

    # Pure-JAX reference with the same bf16 operand quantization as the kernel.
    sigma_ref = _power_iteration_sigma(w, u0, v0, n_iters=1)
    x_q = x.astype(jnp.bfloat16).astype(jnp.float32)
    w_q = w.astype(jnp.bfloat16).astype(jnp.float32)
    z_ref = (x_q @ w_q.T) * (1.0 / sigma_ref) + b
    ref = jnp.maximum(z_ref, 0.01 * z_ref)

    assert out.shape == (B, OUT)
    assert jnp.allclose(out, ref, atol=2e-2, rtol=2e-2), "mismatch vs reference"

    print("KERNEL_OK")
</pallas_src>

<mosaic_0001>
module attributes {stable_mosaic.version = 11 : i64} {
  func.func @lsl_kernel(%arg0: i32, %arg1: i32, %arg2: i32, %arg3: memref<1x1xf32, #tpu.memory_space<smem>>, %arg4: memref<8x128xbf16, #tpu.memory_space<vmem>>, %arg5: memref<128x128xbf16, #tpu.memory_space<vmem>>, %arg6: memref<1x128xf32, #tpu.memory_space<vmem>>, %arg7: memref<8x128xf32, #tpu.memory_space<vmem>>, %arg8: memref<8x128xf32, #tpu.memory_space<vmem>>) attributes {dimension_semantics = [#tpu.dimension_semantics<parallel>, #tpu.dimension_semantics<parallel>, #tpu.dimension_semantics<arbitrary>], iteration_bounds = array<i64: 1, 1, 1>, scalar_prefetch = 0 : i64, scratch_operands = 1 : i64, tpu.core_type = #tpu.core_type<tc>, window_params = [{transform_indices = @transform_0, window_bounds = array<i64: 1, 1>}, {transform_indices = @transform_1, window_bounds = array<i64: 8, 128>}, {transform_indices = @transform_2, window_bounds = array<i64: 128, 128>}, {transform_indices = @transform_3, window_bounds = array<i64: 1, 128>}, {transform_indices = @transform_4, window_bounds = array<i64: 8, 128>}]} {
    %c0_i32 = arith.constant 0 : i32
    %0 = arith.cmpi eq, %arg2, %c0_i32 : i32
    %1 = arith.extui %0 : i1 to i32
    %c0_i32_0 = arith.constant 0 : i32
    %2 = arith.cmpi ne, %1, %c0_i32_0 : i32
    scf.if %2 {
      %cst_10 = arith.constant 0.000000e+00 : f32
      %12 = vector.broadcast %cst_10 : f32 to vector<8x128xf32>
      %c0_11 = arith.constant 0 : index
      %c0_12 = arith.constant 0 : index
      %13 = vector.load %arg8[%c0_11, %c0_12] : memref<8x128xf32, #tpu.memory_space<vmem>>, vector<8x128xf32>
      tpu.vector_store %arg8[%c0_11, %c0_12], %12 {strides = array<i32>} : memref<8x128xf32, #tpu.memory_space<vmem>>, vector<8x128xf32>,
    } else {
    }
    %c0 = arith.constant 0 : index
    %c0_1 = arith.constant 0 : index
    %3 = vector.load %arg8[%c0, %c0_1] : memref<8x128xf32, #tpu.memory_space<vmem>>, vector<8x128xf32>
    %c0_2 = arith.constant 0 : index
    %c0_3 = arith.constant 0 : index
    %4 = vector.load %arg4[%c0_2, %c0_3] : memref<8x128xbf16, #tpu.memory_space<vmem>>, vector<8x128xbf16>
    %c0_4 = arith.constant 0 : index
    %c0_5 = arith.constant 0 : index
    %5 = vector.load %arg5[%c0_4, %c0_5] : memref<128x128xbf16, #tpu.memory_space<vmem>>, vector<128x128xbf16>
    %cst = arith.constant dense<0.000000e+00> : vector<8x128xf32>
    %6 = tpu.matmul %4, %5, %cst {dimension_numbers = #tpu.dot_dimension_numbers<[1], [1], [0], [0], [0, 0, 1, 0], [], []>} : vector<8x128xbf16>, vector<128x128xbf16>, vector<8x128xf32> -> vector<8x128xf32>
    %7 = arith.addf %3, %6 : vector<8x128xf32>
    %c0_6 = arith.constant 0 : index
    %c0_7 = arith.constant 0 : index
    %8 = vector.load %arg8[%c0_6, %c0_7] : memref<8x128xf32, #tpu.memory_space<vmem>>, vector<8x128xf32>
    tpu.vector_store %arg8[%c0_6, %c0_7], %7 {strides = array<i32>} : memref<8x128xf32, #tpu.memory_space<vmem>>, vector<8x128xf32>,
    %c0_i32_8 = arith.constant 0 : i32
    %9 = arith.cmpi eq, %arg2, %c0_i32_8 : i32
    %10 = arith.extui %9 : i1 to i32
    %c0_i32_9 = arith.constant 0 : i32
    %11 = arith.cmpi ne, %10, %c0_i32_9 : i32
    scf.if %11 {
      %c0_10 = arith.constant 0 : index
      %c0_11 = arith.constant 0 : index
      %12 = memref.load %arg3[%c0_10, %c0_11] : memref<1x1xf32, #tpu.memory_space<smem>>
      %c0_12 = arith.constant 0 : index
      %c0_13 = arith.constant 0 : index
      %13 = vector.load %arg8[%c0_12, %c0_13] : memref<8x128xf32, #tpu.memory_space<vmem>>, vector<8x128xf32>
      %14 = vector.broadcast %12 : f32 to vector<8x128xf32>
      %15 = arith.mulf %13, %14 : vector<8x128xf32>
      %c0_14 = arith.constant 0 : index
      %c0_15 = arith.constant 0 : index
      %16 = vector.load %arg6[%c0_14, %c0_15] : memref<1x128xf32, #tpu.memory_space<vmem>>, vector<1x128xf32>
      %17 = vector.broadcast %16 : vector<1x128xf32> to vector<8x128xf32>
      %18 = arith.addf %15, %17 : vector<8x128xf32>
      %cst_16 = arith.constant 0.00999999977 : f32
      %19 = vector.broadcast %cst_16 : f32 to vector<8x128xf32>
      %20 = arith.mulf %19, %18 : vector<8x128xf32>
      %21 = arith.maximumf %18, %20 : vector<8x128xf32>
      %c0_17 = arith.constant 0 : index
      %c0_18 = arith.constant 0 : index
      %22 = vector.load %arg7[%c0_17, %c0_18] : memref<8x128xf32, #tpu.memory_space<vmem>>, vector<8x128xf32>
      tpu.vector_store %arg7[%c0_17, %c0_18], %21 {strides = array<i32>} : memref<8x128xf32, #tpu.memory_space<vmem>>, vector<8x128xf32>,
    } else {
    }
    return
  }
  func.func @transform_0(%arg0: i32, %arg1: i32, %arg2: i32) -> (i32, i32) {
    %c0_i32 = arith.constant 0 : i32
    %c0_i32_0 = arith.constant 0 : i32
    %c0_i32_1 = arith.constant 0 : i32
    return %c0_i32, %c0_i32_0 : i32, i32
  }
  func.func @transform_1(%arg0: i32, %arg1: i32, %arg2: i32) -> (i32, i32) {
    %c0_i32 = arith.constant 0 : i32
    return %arg0, %arg2 : i32, i32
  }
  func.func @transform_2(%arg0: i32, %arg1: i32, %arg2: i32) -> (i32, i32) {
    %c0_i32 = arith.constant 0 : i32
    return %arg1, %arg2 : i32, i32
  }
  func.func @transform_3(%arg0: i32, %arg1: i32, %arg2: i32) -> (i32, i32) {
    %c0_i32 = arith.constant 0 : i32
    %c0_i32_0 = arith.constant 0 : i32
    return %c0_i32, %arg1 : i32, i32
  }
  func.func @transform_4(%arg0: i32, %arg1: i32, %arg2: i32) -> (i32, i32) {
    %c0_i32 = arith.constant 0 : i32
    return %arg0, %arg1 : i32, i32
  }
}

</mosaic_0001>

<llo_original>
// kernel: lsl_forward.1
$region0: #{lsl_forward.1}
  #allocation0 [shape = 'u32[]', space=smem, size = 0x4, offset = 0x4, fixed_abs, tag = 'smem constant byte address 0x4 - core index']
  #allocation1 [shape = 'u32[144,128]{1,0:T(1,128)}', space=vmem, size = 0x12000, scoped, tag = 'internal scratch']
  #allocation2 [shape = 'f32[8,128]{1,0:T(8,128)}', space=vmem, size = 0x1000, scoped, tag = 'scratch operand']
  #allocation3 [shape = 'f32[1,1]{1,0:T(1,128)S(6)}', space=smem, size = 0x200, scoped, tag = 'scoped memory for lsl_forward.1']
  %s0 = inlined_call_operand.<no memory space> [shape: f32[1,1], index: 0, kind: input, shape index: {}]
  %s1 = inlined_call_operand.vmem [shape: bf16[8,128], index: 1, kind: input, shape index: {}]
  %s2 = inlined_call_operand.vmem [shape: bf16[128,128], index: 2, kind: input, shape index: {}]
  %s3 = inlined_call_operand.vmem [shape: f32[1,128], index: 3, kind: input, shape index: {}]
  %s4 = inlined_call_operand.hbm [shape: f32[8,128], index: 4, kind: output, shape index: {}]
  %s5 = sld [smem:[#allocation0]]
  $region34: #{lsl_forward.1} parent=0
    _
  %s7 = ssub.s32 1, %s5
  %s8 = scalar_select 0, %s7, %s5
  %9 = sst [smem:[#allocation3]] %s0
  $region1: #{lsl_forward.1} parent=0
    #allocation4 [shape = 'u8[4096]{0}', space=vmem, size = 0x1000, scoped, tag = 'output window, operand 0, single buffered']
    #allocation5 [shape = 's32[1]{0}', space=sflag, size = 0x4, scoped, tag = 'scoped memory for lsl_forward.1']
    %10 = vsyncpa [#allocation5], 0
    // Predicated region
    $region2: #{lsl_forward.1} parent=1 // pred_check
      _
    $region3: #{lsl_forward.1} parent=1 // pred_check_branch
      %12 = sbr.rel (0) target = $region5
    $region4: #{lsl_forward.1} parent=1 // pred_region
      _
    $region5: #{lsl_forward.1} parent=1 // pred_fallthru
      _
    // Predicated region
    $region6: #{lsl_forward.1} parent=1 // pred_check
      _
    $region7: #{lsl_forward.1} parent=1 // pred_check_branch
      %14 = sbr.rel (0) target = $region9
    $region8: #{lsl_forward.1} parent=1 // pred_region
      _
    $region9: #{lsl_forward.1} parent=1 // pred_fallthru
      _
    // Predicated region
    $region10: #{lsl_forward.1} parent=1 // pred_check
      _
    $region11: #{lsl_forward.1} parent=1 // pred_check_branch
      %16 = sbr.rel (0) target = $region13
    $region12: #{lsl_forward.1} parent=1 // pred_region
      _
    $region13: #{lsl_forward.1} parent=1 // pred_fallthru
      _
    // Predicated region
    $region14: #{lsl_forward.1} parent=1 // pred_check
      _
    $region15: #{lsl_forward.1} parent=1 // pred_check_branch
      %18 = sbr.rel (0) target = $region17
    $region16: #{lsl_forward.1} parent=1 // pred_region
      _
    $region17: #{lsl_forward.1} parent=1 // pred_fallthru
      _
    %p20 = scmp.eq.s32.totalorder 0, 0
    // Predicated region
    $region18: #{lsl_forward.1} parent=1 // pred_check
      %p21 = pneg %p20
    $region19: #{lsl_forward.1} parent=1 // pred_check_branch
      %23 = sbr.rel (%p21) target = $region21
    $region20: #{lsl_forward.1} parent=1 // pred_region
      %24 = vst [vmem:[#allocation2] sm:$0xff] 0.0
    $region21: #{lsl_forward.1} parent=1 // pred_fallthru
      _
    %v25 = vld [vmem:[#allocation2] sm:$0xff]
    %v26 = vld [vmem:[%s1] sm:$0xf]
    %v27 = vld [vmem:[%s2] sm:$0xf]
    %v28 = vld [vmem:[%s2 + $0x4] sm:$0xf]
    %v29 = vld [vmem:[%s2 + $0x8] sm:$0xf]
    %v30 = vld [vmem:[%s2 + $0xc] sm:$0xf]
    %v31 = vld [vmem:[%s2 + $0x10] sm:$0xf]
    %v32 = vld [vmem:[%s2 + $0x14] sm:$0xf]
    %v33 = vld [vmem:[%s2 + $0x18] sm:$0xf]
    %v34 = vld [vmem:[%s2 + $0x1c] sm:$0xf]
    %v35 = vld [vmem:[%s2 + $0x20] sm:$0xf]
    %v36 = vld [vmem:[%s2 + $0x24] sm:$0xf]
    %v37 = vld [vmem:[%s2 + $0x28] sm:$0xf]
    %v38 = vld [vmem:[%s2 + $0x2c] sm:$0xf]
    %v39 = vld [vmem:[%s2 + $0x30] sm:$0xf]
    %v40 = vld [vmem:[%s2 + $0x34] sm:$0xf]
    %v41 = vld [vmem:[%s2 + $0x38] sm:$0xf]
    %v42 = vld [vmem:[%s2 + $0x3c] sm:$0xf]
    %v59 = vunpack.c.l.b16 %v27
    %v60 = vunpack.c.l.b16 %v28
    %v61 = vunpack.c.l.b16 %v29
    %v62 = vunpack.c.l.b16 %v30
    %v63 = vunpack.c.l.b16 %v31
    %v64 = vunpack.c.l.b16 %v32
    %v65 = vunpack.c.l.b16 %v33
    %v66 = vunpack.c.l.b16 %v34
    %v67 = vunpack.c.l.b16 %v35
    %v68 = vunpack.c.l.b16 %v36
    %v69 = vunpack.c.l.b16 %v37
    %v70 = vunpack.c.l.b16 %v38
    %v71 = vunpack.c.l.b16 %v39
    %v72 = vunpack.c.l.b16 %v40
    %v73 = vunpack.c.l.b16 %v41
    %v74 = vunpack.c.l.b16 %v42
    %v75 = vpack.c.b16 %v60, %v59
    %v76 = vpack.c.b16 %v62, %v61
    %v77 = vpack.c.b16 %v64, %v63
    %v78 = vpack.c.b16 %v66, %v65
    %v79 = vpack.c.b16 %v68, %v67
    %v80 = vpack.c.b16 %v70, %v69
    %v81 = vpack.c.b16 %v72, %v71
    %v82 = vpack.c.b16 %v74, %v73
    %91 = vmatprep.subr.bf16.mxu0 0
    %92 = vmatpush1.bf16.xpose.msra.mxu0 %v75
    %93 = vmatprep.subr.bf16.mxu0 0
    %94 = vmatpush1.bf16.xpose.msra.mxu0 %v76
    %95 = vmatprep.subr.bf16.mxu0 0
    %96 = vmatpush1.bf16.xpose.msra.mxu0 %v77
    %97 = vmatprep.subr.bf16.mxu0 0
    %98 = vmatpush1.bf16.xpose.msra.mxu0 %v78
    %99 = vmatprep.subr.bf16.mxu0 0
    %100 = vmatpush1.bf16.xpose.msra.mxu0 %v79
    %101 = vmatprep.subr.bf16.mxu0 0
    %102 = vmatpush1.bf16.xpose.msra.mxu0 %v80
    %103 = vmatprep.subr.bf16.mxu0 0
    %104 = vmatpush1.bf16.xpose.msra.mxu0 %v81
    %105 = vmatprep.subr.bf16.mxu0 0
    %106 = vmatpush1.bf16.xpose.msra.mxu0 %v82
    %107 = vmatprep.subr.bf16.mxu0 0
    %108 = vmatpush1.bf16.xpose.msra.mxu0 0
    %109 = vmatprep.subr.bf16.mxu0 0
    %110 = vmatpush1.bf16.xpose.msra.mxu0 0
    %111 = vmatprep.subr.bf16.mxu0 0
    %112 = vmatpush1.bf16.xpose.msra.mxu0 0
    %113 = vmatprep.subr.bf16.mxu0 0
    %114 = vmatpush1.bf16.xpose.msra.mxu0 0
    %115 = vmatprep.subr.bf16.mxu0 0
    %116 = vmatpush1.bf16.xpose.msra.mxu0 0
    %117 = vmatprep.subr.bf16.mxu0 0
    %118 = vmatpush1.bf16.xpose.msra.mxu0 0
    %119 = vmatprep.subr.bf16.mxu0 0
    %120 = vmatpush1.bf16.xpose.msra.mxu0 0
    %121 = vmatprep.subr.bf16.mxu0 0
    %122 = vmatpush1.bf16.xpose.msra.mxu0 0
    %123 = vmatprep.mubr.bf16.mxu0 0
    %124 = vmatmul.mubr.bf16.gmra.mrb[0].mxu0 %v26
    %v125 = vpop.f32.mrb[0].mxu0
    %v126 = vadd.f32 0.0, %v125
    %v127 = vpop.f32.mrb[0].mxu0
    %v128 = vpop.f32.mrb[0].mxu0
    %v129 = vpop.f32.mrb[0].mxu0
    %130 = vdwg.mxu0
    %v131 = vadd.f32 %v25, %v126
    %132 = vst [vmem:[#allocation2] sm:$0xff] %v131
    // Predicated region
    $region22: #{lsl_forward.1} parent=1 // pred_check
      %p133 = pneg %p20
    $region23: #{lsl_forward.1} parent=1 // pred_check_branch
      %135 = sbr.rel (%p133) target = $region25
    $region24: #{lsl_forward.1} parent=1 // pred_region
      %s136 = sld [smem:[#allocation3]]
      %v137 = vld [vmem:[#allocation2] sm:$0xff]
      %v138 = vstv %s136
      %v139 = vmul.f32 %v137, %v138
      %v140 = vld [vmem:[%s3] sm:$0x1]
      %v142 = vlaneseq
      %v143 = vshrl.u32 %v142, 7
      %v144 = vsub.s32 0, %v143
      %v145 = vrot.slane %v140, %v144
      %v147 = vadd.f32 %v139, %v145
      %v148 = vmul.f32 %v147, 0.01
      %v149 = vmax.f32 %v147, %v148
      %150 = vst [vmem:[#allocation4] sm:$0xff] %v149
    $region25: #{lsl_forward.1} parent=1 // pred_fallthru
      _
    // Predicated region
    $region26: #{lsl_forward.1} parent=1 // pred_check
      _
    $region27: #{lsl_forward.1} parent=1 // pred_check_branch
      %152 = sbr.rel (0) target = $region29
    $region28: #{lsl_forward.1} parent=1 // pred_region
      %s154 = ssub.s32 128, 128
      %155 = vsyncadd [#allocation5], %s154
      %s157 = sshll.u32 [#allocation4], 4
      %s158 = int_to_ptr.vmem [resolvable:$true] %s157
      %160 = dma.vmem_to_hbm [thread:$0]  %s158, 128, %s4, [#allocation5]
    $region29: #{lsl_forward.1} parent=1 // pred_fallthru
      _
    // Predicated region
    $region30: #{lsl_forward.1} parent=1 // pred_check
      _
    $region31: #{lsl_forward.1} parent=1 // pred_check_branch
      %162 = sbr.rel (0) target = $region33
    $region32: #{lsl_forward.1} parent=1 // pred_region
      %163 = dma.done [#allocation5], 128
    $region33: #{lsl_forward.1} parent=1 // pred_fallthru
      _
    %164 = vsyncpa [#allocation5], 1

</llo_original>
